<compile_context>
chip_gen: v6e
topology: v6e:2x2x1
jax: 0.10.0
libtpu: 0.0.40
codegen_flags: <defaults>
</compile_context>

<pallas_src>
import functools

import jax
import jax.numpy as jnp
from jax import lax
from jax.experimental import pallas as pl
from jax.experimental.pallas import tpu as pltpu


def _round_up(n, m):
    return ((n + m - 1) // m) * m


def _residual_attn_kernel(x_ref, wqkv_ref, wo_ref, out_ref, *maybe_attn_ref,
                          bt, L, Dp, with_attn):
    # x_ref/out_ref: (bt*L, D); wqkv_ref: (D, 3*Dp) bf16; wo_ref: (Dp, D) bf16
    # attn_ref (optional): (bt*L, L)
    attn_ref = maybe_attn_ref[0] if with_attn else None

    x_f32 = x_ref[...].astype(jnp.float32)                     # (bt*L, D)
    x_bf = x_ref[...].astype(jnp.bfloat16)

    # Fused q/k/v projection: one MXU pass over the concatenated bf16 weight
    # (softmax scale pre-folded into the q columns, each projection block
    # zero-padded to Dp so the slices below are 128-lane-tile aligned).
    qkv = jnp.dot(x_bf, wqkv_ref[...],
                  preferred_element_type=jnp.float32)           # (bt*L, 3*Dp)
    q = qkv[:, 0 * Dp:1 * Dp].reshape(bt, L, Dp)
    k = qkv[:, 1 * Dp:2 * Dp].reshape(bt, L, Dp)
    v = qkv[:, 2 * Dp:3 * Dp].reshape(bt, L, Dp)

    # Batched scores, contracting over Dp (padding lanes are zero in both q
    # and k, so they contribute nothing).  bf16 operands, f32 accumulation,
    # no XLU transpose of the (L, Dp) tile.
    scores = lax.dot_general(
        q.astype(jnp.bfloat16), k.astype(jnp.bfloat16),
        dimension_numbers=(((2,), (2,)), ((0,), (0,))),
        preferred_element_type=jnp.float32)                     # (bt, L, L)

    # Numerically-stable softmax pieces over keys.
    m = jnp.max(scores, axis=-1, keepdims=True)
    e = jnp.exp(scores - m)
    denom = jnp.sum(e, axis=-1, keepdims=True)

    # Unnormalized context, then one (bt, L, 1)-shaped approx-reciprocal
    # normalization (EUP slot) — never a full (bt, L, L) pass.
    ctx_un = lax.dot_general(
        e.astype(jnp.bfloat16), v.astype(jnp.bfloat16),
        dimension_numbers=(((2,), (1,)), ((0,), (0,))),
        preferred_element_type=jnp.float32)                     # (bt, L, Dp)
    ctx = ctx_un * pl.reciprocal(denom, approx=True)

    module_out = jnp.dot(ctx.reshape(bt * L, Dp).astype(jnp.bfloat16),
                         wo_ref[...],
                         preferred_element_type=jnp.float32)    # (bt*L, D)

    # Residual add in f32, cast back to the I/O dtype.
    out_ref[...] = (x_f32 + module_out).astype(out_ref.dtype)

    if with_attn:
        # Exact divide for the returned attention map (approx reciprocal is
        # only used on the ctx path).
        attn = (e / denom).reshape(bt * L, L)
        attn_ref[...] = attn.astype(attn_ref.dtype)


def residual_for_attention(x, wq, wk, wv, wo, *, prediction_mode=False,
                           target_rows=512):
    """Forward pass of Residual_For_Attention wrapping single-head attention.

    x: (B, L, D); wq, wk, wv, wo: (D, D)
    Returns x + attn_module(x); with prediction_mode=True also (B, L, L) attn.
    """
    B, L, D = x.shape
    scale = 1.0 / float(D) ** 0.5
    Dp = _round_up(D, 128)

    # Fold the softmax scale into wq, zero-pad every projection block to Dp
    # columns (lane-tile aligned slices, MXU-friendly contracting dim) and
    # cast the fused weight to bf16 once in the wrapper.
    def pad_cols(w):
        return jnp.pad(w, ((0, 0), (0, Dp - D)))

    wqkv = jnp.concatenate(
        [pad_cols(wq * scale), pad_cols(wk), pad_cols(wv)],
        axis=1).astype(jnp.bfloat16)                            # (D, 3*Dp)
    wo_p = jnp.pad(wo, ((0, Dp - D), (0, 0))).astype(jnp.bfloat16)  # (Dp, D)

    # Batch tile: big slabs (memory-bound roofline lever), but at least two
    # grid steps when B >= 2 so both v7x TensorCores get work.  Non-divisible
    # B is handled by zero-padding the batch and slicing off the tail.
    bt = max(1, target_rows // max(L, 1))
    bt = min(bt, B)
    if B >= 2:
        bt = min(bt, -(-B // 2))
    num_tiles = -(-B // bt)
    B_pad = num_tiles * bt
    if B_pad != B:
        x = jnp.concatenate(
            [x, jnp.zeros((B_pad - B, L, D), dtype=x.dtype)], axis=0)

    # Present x / out as 2-D (B_pad*L, D) row slabs (taller M per store).
    x2 = x.reshape(B_pad * L, D)

    kernel = functools.partial(_residual_attn_kernel, bt=bt, L=L, Dp=Dp,
                               with_attn=prediction_mode)

    in_specs = [
        pl.BlockSpec((bt * L, D), lambda i: (i, 0)),
        pl.BlockSpec((D, 3 * Dp), lambda i: (0, 0)),
        pl.BlockSpec((Dp, D), lambda i: (0, 0)),
    ]
    out_specs = [pl.BlockSpec((bt * L, D), lambda i: (i, 0))]
    out_shape = [jax.ShapeDtypeStruct((B_pad * L, D), x.dtype)]
    if prediction_mode:
        out_specs.append(pl.BlockSpec((bt * L, L), lambda i: (i, 0)))
        out_shape.append(jax.ShapeDtypeStruct((B_pad * L, L), x.dtype))

    results = pl.pallas_call(
        kernel,
        out_shape=tuple(out_shape),
        grid_spec=pltpu.PrefetchScalarGridSpec(
            num_scalar_prefetch=0,
            grid=(num_tiles,),
            in_specs=in_specs,
            out_specs=out_specs,
        ),
        compiler_params=pltpu.CompilerParams(
            dimension_semantics=("parallel",),
            vmem_limit_bytes=64 * 1024 * 1024),
    )(x2, wqkv, wo_p)

    if prediction_mode:
        out2, attn2 = results
        return (out2[:B * L].reshape(B, L, D),
                attn2[:B * L].reshape(B, L, L))
    (out2,) = results
    return out2[:B * L].reshape(B, L, D)


def _reference(x, wq, wk, wv, wo):
    scale = 1.0 / float(x.shape[-1]) ** 0.5
    q = jnp.einsum("bld,de->ble", x, wq)
    k = jnp.einsum("bld,de->ble", x, wk)
    v = jnp.einsum("bld,de->ble", x, wv)
    scores = jnp.einsum("bqd,bkd->bqk", q, k) * scale
    attn = jax.nn.softmax(scores, axis=-1)
    ctx = jnp.einsum("bqk,bkd->bqd", attn, v)
    out = jnp.einsum("bld,de->ble", ctx, wo)
    return x + out, attn


if __name__ == "__main__":
    B, L, D = 2, 8, 32

    key = jax.random.PRNGKey(0)
    kx, kq, kk, kv, ko = jax.random.split(key, 5)
    x = jax.random.normal(kx, (B, L, D), dtype=jnp.float32)
    wq = jax.random.normal(kq, (D, D), dtype=jnp.float32) * 0.1
    wk = jax.random.normal(kk, (D, D), dtype=jnp.float32) * 0.1
    wv = jax.random.normal(kv, (D, D), dtype=jnp.float32) * 0.1
    wo = jax.random.normal(ko, (D, D), dtype=jnp.float32) * 0.1

    # prediction_mode=True path: returns (x + module_out, attn).
    out, attn = residual_for_attention(x, wq, wk, wv, wo, prediction_mode=True)
    out = jax.block_until_ready(out)
    attn = jax.block_until_ready(attn)

    # prediction_mode=False path: returns x + module_out only (attn never
    # written to HBM in this variant).
    out_only = jax.block_until_ready(
        residual_for_attention(x, wq, wk, wv, wo, prediction_mode=False))

    ref_out, ref_attn = _reference(x, wq, wk, wv, wo)
    # Tolerance sized for bf16 MXU operands (f32 accumulation) + approx
    # reciprocal on the ctx normalization.
    assert jnp.allclose(out, ref_out, atol=2e-2, rtol=2e-2)
    assert jnp.allclose(attn, ref_attn, atol=2e-2, rtol=2e-2)
    assert jnp.allclose(out_only, ref_out, atol=2e-2, rtol=2e-2)

    # Odd batch exercises the padding (non-divisible B) path.
    B2 = 3
    x3 = jax.random.normal(jax.random.PRNGKey(1), (B2, L, D), dtype=jnp.float32)
    out3, attn3 = residual_for_attention(x3, wq, wk, wv, wo,
                                         prediction_mode=True)
    out3 = jax.block_until_ready(out3)
    ref_out3, ref_attn3 = _reference(x3, wq, wk, wv, wo)
    assert out3.shape == (B2, L, D) and attn3.shape == (B2, L, L)
    assert jnp.allclose(out3, ref_out3, atol=2e-2, rtol=2e-2)
    assert jnp.allclose(attn3, ref_attn3, atol=2e-2, rtol=2e-2)

    print("KERNEL_OK")
</pallas_src>

<mosaic_0001>
module attributes {stable_mosaic.version = 11 : i64} {
  func.func @_residual_attn_kernel(%arg0: i32, %arg1: memref<8x32xf32, #tpu.memory_space<vmem>>, %arg2: memref<32x384xbf16, #tpu.memory_space<vmem>>, %arg3: memref<128x32xbf16, #tpu.memory_space<vmem>>, %arg4: memref<8x32xf32, #tpu.memory_space<vmem>>, %arg5: memref<8x8xf32, #tpu.memory_space<vmem>>) attributes {dimension_semantics = [#tpu.dimension_semantics<parallel>], iteration_bounds = array<i64: 2>, scalar_prefetch = 0 : i64, scratch_operands = 0 : i64, tpu.core_type = #tpu.core_type<tc>, window_params = [{transform_indices = @transform_0, window_bounds = array<i64: 8, 32>}, {pipeline_mode = #tpu.pipeline_mode<synchronous>, transform_indices = @transform_1, window_bounds = array<i64: 32, 384>}, {pipeline_mode = #tpu.pipeline_mode<synchronous>, transform_indices = @transform_2, window_bounds = array<i64: 128, 32>}, {transform_indices = @transform_3, window_bounds = array<i64: 8, 32>}, {transform_indices = @transform_4, window_bounds = array<i64: 8, 8>}]} {
    %c0 = arith.constant 0 : index
    %c0_0 = arith.constant 0 : index
    %0 = vector.load %arg1[%c0, %c0_0] : memref<8x32xf32, #tpu.memory_space<vmem>>, vector<8x32xf32>
    %c0_1 = arith.constant 0 : index
    %c0_2 = arith.constant 0 : index
    %1 = vector.load %arg1[%c0_1, %c0_2] : memref<8x32xf32, #tpu.memory_space<vmem>>, vector<8x32xf32>
    %2 = arith.truncf %1 : vector<8x32xf32> to vector<8x32xbf16>
    %c0_3 = arith.constant 0 : index
    %c0_4 = arith.constant 0 : index
    %3 = vector.load %arg2[%c0_3, %c0_4] : memref<32x384xbf16, #tpu.memory_space<vmem>>, vector<32x384xbf16>
    %cst = arith.constant dense<0.000000e+00> : vector<8x384xf32>
    %4 = tpu.matmul %2, %3, %cst {dimension_numbers = #tpu.dot_dimension_numbers<[1], [0], [0], [1], [0, 0, 1, 1], [], []>} : vector<8x32xbf16>, vector<32x384xbf16>, vector<8x384xf32> -> vector<8x384xf32>
    %5 = vector.extract_strided_slice %4 {offsets = [0, 0], sizes = [8, 128], strides = [1, 1]} : vector<8x384xf32> to vector<8x128xf32>
    %6 = vector.shape_cast %5 : vector<8x128xf32> to vector<1x8x128xf32>
    %7 = vector.extract_strided_slice %4 {offsets = [0, 128], sizes = [8, 128], strides = [1, 1]} : vector<8x384xf32> to vector<8x128xf32>
    %8 = vector.shape_cast %7 : vector<8x128xf32> to vector<1x8x128xf32>
    %9 = vector.extract_strided_slice %4 {offsets = [0, 256], sizes = [8, 128], strides = [1, 1]} : vector<8x384xf32> to vector<8x128xf32>
    %10 = vector.shape_cast %9 : vector<8x128xf32> to vector<1x8x128xf32>
    %11 = arith.truncf %6 : vector<1x8x128xf32> to vector<1x8x128xbf16>
    %12 = arith.truncf %8 : vector<1x8x128xf32> to vector<1x8x128xbf16>
    %cst_5 = arith.constant dense<0.000000e+00> : vector<1x8x8xf32>
    %13 = tpu.matmul %11, %12, %cst_5 {dimension_numbers = #tpu.dot_dimension_numbers<[2], [2], [1], [1], [0, 0, 0, 1, 1, 1], [0], [0]>} : vector<1x8x128xbf16>, vector<1x8x128xbf16>, vector<1x8x8xf32> -> vector<1x8x8xf32>
    %cst_6 = arith.constant dense<0xFF800000> : vector<1x8xf32>
    %14 = vector.multi_reduction <maximumf>, %13, %cst_6 [2] : vector<1x8x8xf32> to vector<1x8xf32>
    %15 = vector.shape_cast %14 : vector<1x8xf32> to vector<1x8x1xf32>
    %16 = vector.broadcast %15 : vector<1x8x1xf32> to vector<1x8x8xf32>
    %17 = arith.subf %13, %16 : vector<1x8x8xf32>
    %18 = math.exp %17 : vector<1x8x8xf32>
    %cst_7 = arith.constant dense<0.000000e+00> : vector<1x8xf32>
    %19 = vector.multi_reduction <add>, %18, %cst_7 [2] : vector<1x8x8xf32> to vector<1x8xf32>
    %20 = vector.shape_cast %19 : vector<1x8xf32> to vector<1x8x1xf32>
    %21 = arith.truncf %18 : vector<1x8x8xf32> to vector<1x8x8xbf16>
    %22 = arith.truncf %10 : vector<1x8x128xf32> to vector<1x8x128xbf16>
    %cst_8 = arith.constant dense<0.000000e+00> : vector<1x8x128xf32>
    %23 = tpu.matmul %21, %22, %cst_8 {dimension_numbers = #tpu.dot_dimension_numbers<[2], [1], [1], [2], [0, 0, 0, 1, 1, 2], [0], [0]>} : vector<1x8x8xbf16>, vector<1x8x128xbf16>, vector<1x8x128xf32> -> vector<1x8x128xf32>
    %24 = tpu.reciprocal %20 {approx = true} : vector<1x8x1xf32> -> vector<1x8x1xf32>
    %25 = vector.broadcast %24 : vector<1x8x1xf32> to vector<1x8x128xf32>
    %26 = arith.mulf %23, %25 : vector<1x8x128xf32>
    %27 = vector.shape_cast %26 : vector<1x8x128xf32> to vector<8x128xf32>
    %28 = arith.truncf %27 : vector<8x128xf32> to vector<8x128xbf16>
    %c0_9 = arith.constant 0 : index
    %c0_10 = arith.constant 0 : index
    %29 = vector.load %arg3[%c0_9, %c0_10] : memref<128x32xbf16, #tpu.memory_space<vmem>>, vector<128x32xbf16>
    %cst_11 = arith.constant dense<0.000000e+00> : vector<8x32xf32>
    %30 = tpu.matmul %28, %29, %cst_11 {dimension_numbers = #tpu.dot_dimension_numbers<[1], [0], [0], [1], [0, 0, 1, 1], [], []>} : vector<8x128xbf16>, vector<128x32xbf16>, vector<8x32xf32> -> vector<8x32xf32>
    %31 = arith.addf %0, %30 : vector<8x32xf32>
    %c0_12 = arith.constant 0 : index
    %c0_13 = arith.constant 0 : index
    %32 = vector.load %arg4[%c0_12, %c0_13] : memref<8x32xf32, #tpu.memory_space<vmem>>, vector<8x32xf32>
    tpu.vector_store %arg4[%c0_12, %c0_13], %31 {strides = array<i32>} : memref<8x32xf32, #tpu.memory_space<vmem>>, vector<8x32xf32>,
    %33 = vector.broadcast %20 : vector<1x8x1xf32> to vector<1x8x8xf32>
    %34 = arith.divf %18, %33 : vector<1x8x8xf32>
    %35 = vector.shape_cast %34 : vector<1x8x8xf32> to vector<8x8xf32>
    %c0_14 = arith.constant 0 : index
    %c0_15 = arith.constant 0 : index
    %36 = vector.load %arg5[%c0_14, %c0_15] : memref<8x8xf32, #tpu.memory_space<vmem>>, vector<8x8xf32>
    tpu.vector_store %arg5[%c0_14, %c0_15], %35 {strides = array<i32>} : memref<8x8xf32, #tpu.memory_space<vmem>>, vector<8x8xf32>,
    return
  }
  func.func @transform_0(%arg0: i32) -> (i32, i32) {
    %c0_i32 = arith.constant 0 : i32
    %c0_i32_0 = arith.constant 0 : i32
    return %arg0, %c0_i32 : i32, i32
  }
  func.func @transform_1(%arg0: i32) -> (i32, i32) {
    %c0_i32 = arith.constant 0 : i32
    %c0_i32_0 = arith.constant 0 : i32
    %c0_i32_1 = arith.constant 0 : i32
    return %c0_i32, %c0_i32_0 : i32, i32
  }
  func.func @transform_2(%arg0: i32) -> (i32, i32) {
    %c0_i32 = arith.constant 0 : i32
    %c0_i32_0 = arith.constant 0 : i32
    %c0_i32_1 = arith.constant 0 : i32
    return %c0_i32, %c0_i32_0 : i32, i32
  }
  func.func @transform_3(%arg0: i32) -> (i32, i32) {
    %c0_i32 = arith.constant 0 : i32
    %c0_i32_0 = arith.constant 0 : i32
    return %arg0, %c0_i32 : i32, i32
  }
  func.func @transform_4(%arg0: i32) -> (i32, i32) {
    %c0_i32 = arith.constant 0 : i32
    %c0_i32_0 = arith.constant 0 : i32
    return %arg0, %c0_i32 : i32, i32
  }
}

</mosaic_0001>

<llo_original>
// kernel: tpu_custom_call.1
$region0: #{tpu_custom_call.1}
  #allocation0 [shape = 'u32[]', space=smem, size = 0x4, offset = 0x4, fixed_abs, tag = 'smem constant byte address 0x4 - core index']
  #allocation1 [shape = 'u32[144,128]{1,0:T(1,128)}', space=vmem, size = 0x12000, scoped, tag = 'internal scratch']
  %s0 = inlined_call_operand.vmem [shape: f32[16,32], index: 0, kind: input, shape index: {}]
  %s1 = inlined_call_operand.vmem [shape: bf16[32,384], index: 1, kind: input, shape index: {}]
  %s2 = inlined_call_operand.vmem [shape: bf16[128,32], index: 2, kind: input, shape index: {}]
  %s3 = inlined_call_operand.hbm [shape: f32[16,32], index: 3, kind: output, shape index: {0}]
  %s4 = inlined_call_operand.vmem [shape: f32[16,8], index: 4, kind: output, shape index: {1}]
  %5 = xla_tuple %s3, %s4
  %s6 = sld [smem:[#allocation0]]
  $region53: #{tpu_custom_call.1} parent=0
    _
  %s8 = ssub.s32 1, %s6
  %s9 = scalar_select 0, %s8, %s6
  $region1: #{tpu_custom_call.1} parent=0
    #allocation2 [shape = 'u8[8192]{0}', space=vmem, size = 0x2000, scoped, tag = 'output window, operand 0']
    #allocation3 [shape = 's32[2]{0}', space=sflag, size = 0x8, scoped, tag = 'scoped memory for tpu_custom_call.1']
    %10 = vsyncpa [#allocation3], 0
    %s11 = scalar_lea.sflag [#allocation3], 1
    %12 = vsyncpa %s11, 0
    loop: start=0, step=1, limit=4
    $region2: #{tpu_custom_call.1} parent=1 // loop_pre_header
      _
    $region3: #{tpu_custom_call.1} parent=1 // loop_header
      %s14 = sphi 0, %s18
      %p15 = scmp.ge.s32.totalorder %s14, 4
      %s24 = sphi 0, %s26
      %s27 = sphi 0, %s24
      %s28 = sphi 0, %s27
      %s44 = sphi 0, %s28
      %s48 = sphi 0, %s48
      %s50 = sphi 0, %s48
      %s51 = sphi 0, %s50
      %s65 = sphi 0, %s51
      %s69 = sphi 0, %s69
      %s71 = sphi 0, %s69
      %s72 = sphi 0, %s71
      %s86 = sphi 0, %s72
      %s92 = sphi 0, %s94
      %s95 = sphi 0, %s92
      %s96 = sphi 0, %s95
      %s112 = sphi 0, %s96
      %s118 = sphi 0, %s120
      %s121 = sphi 0, %s118
      %s122 = sphi 0, %s121
      %s138 = sphi 0, %s122
    $region4: #{tpu_custom_call.1} parent=1 // loop_header_branch
      %17 = sbr.rel (%p15) target = $region8
    $region5: #{tpu_custom_call.1} parent=1 // loop_body
      %s19 = ssub.s32 %s14, 1
      %s20 = ssub.s32 %s14, 2
      %s21 = sadd.s32 %s14, 1
      %s22 = ssub.s32 %s14, %s21
      %p23 = scmp.eq.s32.totalorder %s22, 0
      %s25 = sadd.s32 %s24, 1
      %s26 = scalar_select %p23, %s24, %s25
      %p29 = pneg %p23
      %p30 = scmp.eq.s32.totalorder %s14, 1
      %p31 = por %p29, %p30
      %p32 = scmp.ne.s32.totalorder %s24, %s27
      %p33 = scmp.eq.s32.totalorder %s14, 0
      %p34 = por %p32, %p33
      %p35 = scmp.ne.s32.totalorder %s24, %s27
      %p36 = scmp.eq.s32.totalorder %s19, 1
      %p37 = por %p35, %p36
      %p38 = scmp.ne.s32.totalorder %s27, %s28
      %p39 = scmp.eq.s32.totalorder %s19, 0
      %p40 = por %p38, %p39
      %p41 = scmp.ne.s32.totalorder %s27, %s28
      %p42 = scmp.eq.s32.totalorder %s20, 1
      %p43 = por %p41, %p42
      %p45 = scmp.ne.s32.totalorder %s28, %s44
      %p46 = scmp.eq.s32.totalorder %s20, 0
      %p47 = por %p45, %p46
      %s49 = sadd.s32 %s48, 1
      %p52 = scmp.eq.s32.totalorder %s14, 1
      %p53 = scmp.ne.s32.totalorder %s48, %s50
      %p54 = scmp.eq.s32.totalorder %s14, 0
      %p55 = por %p53, %p54
      %p56 = scmp.ne.s32.totalorder %s48, %s50
      %p57 = scmp.eq.s32.totalorder %s19, 1
      %p58 = por %p56, %p57
      %p59 = scmp.ne.s32.totalorder %s50, %s51
      %p60 = scmp.eq.s32.totalorder %s19, 0
      %p61 = por %p59, %p60
      %p62 = scmp.ne.s32.totalorder %s50, %s51
      %p63 = scmp.eq.s32.totalorder %s20, 1
      %p64 = por %p62, %p63
      %p66 = scmp.ne.s32.totalorder %s51, %s65
      %p67 = scmp.eq.s32.totalorder %s20, 0
      %p68 = por %p66, %p67
      %s70 = sadd.s32 %s69, 1
      %p73 = scmp.eq.s32.totalorder %s14, 1
      %p74 = scmp.ne.s32.totalorder %s69, %s71
      %p75 = scmp.eq.s32.totalorder %s14, 0
      %p76 = por %p74, %p75
      %p77 = scmp.ne.s32.totalorder %s69, %s71
      %p78 = scmp.eq.s32.totalorder %s19, 1
      %p79 = por %p77, %p78
      %p80 = scmp.ne.s32.totalorder %s71, %s72
      %p81 = scmp.eq.s32.totalorder %s19, 0
      %p82 = por %p80, %p81
      %p83 = scmp.ne.s32.totalorder %s71, %s72
      %p84 = scmp.eq.s32.totalorder %s20, 1
      %p85 = por %p83, %p84
      %p87 = scmp.ne.s32.totalorder %s72, %s86
      %p88 = scmp.eq.s32.totalorder %s20, 0
      %p89 = por %p87, %p88
      %s90 = ssub.s32 %s14, %s21
      %p91 = scmp.eq.s32.totalorder %s90, 0
      %s93 = sadd.s32 %s92, 1
      %s94 = scalar_select %p91, %s92, %s93
      %p97 = pneg %p91
      %p98 = scmp.eq.s32.totalorder %s14, 1
      %p99 = por %p97, %p98
      %p100 = scmp.ne.s32.totalorder %s92, %s95
      %p101 = scmp.eq.s32.totalorder %s14, 0
      %p102 = por %p100, %p101
      %p103 = scmp.ne.s32.totalorder %s92, %s95
      %p104 = scmp.eq.s32.totalorder %s19, 1
      %p105 = por %p103, %p104
      %p106 = scmp.ne.s32.totalorder %s95, %s96
      %p107 = scmp.eq.s32.totalorder %s19, 0
      %p108 = por %p106, %p107
      %p109 = scmp.ne.s32.totalorder %s95, %s96
      %p110 = scmp.eq.s32.totalorder %s20, 1
      %p111 = por %p109, %p110
      %p113 = scmp.ne.s32.totalorder %s96, %s112
      %p114 = scmp.eq.s32.totalorder %s20, 0
      %p115 = por %p113, %p114
      %s116 = ssub.s32 %s14, %s21
      %p117 = scmp.eq.s32.totalorder %s116, 0
      %s119 = sadd.s32 %s118, 1
      %s120 = scalar_select %p117, %s118, %s119
      %p123 = pneg %p117
      %p124 = scmp.eq.s32.totalorder %s14, 1
      %p125 = por %p123, %p124
      %p126 = scmp.ne.s32.totalorder %s118, %s121
      %p127 = scmp.eq.s32.totalorder %s14, 0
      %p128 = por %p126, %p127
      %p129 = scmp.ne.s32.totalorder %s118, %s121
      %p130 = scmp.eq.s32.totalorder %s19, 1
      %p131 = por %p129, %p130
      %p132 = scmp.ne.s32.totalorder %s121, %s122
      %p133 = scmp.eq.s32.totalorder %s19, 0
      %p134 = por %p132, %p133
      %p135 = scmp.ne.s32.totalorder %s121, %s122
      %p136 = scmp.eq.s32.totalorder %s20, 1
      %p137 = por %p135, %p136
      %p139 = scmp.ne.s32.totalorder %s122, %s138
      %p140 = scmp.eq.s32.totalorder %s20, 0
      %p141 = por %p139, %p140
      %p142 = scmp.le.s32.totalorder 1, %s14
      %p143 = scmp.lt.s32.totalorder %s14, 3
      %p144 = pnand %p142, %p143
      %p145 = pneg %p144
      // Predicated region
      $region9: #{tpu_custom_call.1} parent=5 // pred_check
        _
      $region10: #{tpu_custom_call.1} parent=5 // pred_check_branch
        %147 = sbr.rel (%p144) target = $region12
      $region11: #{tpu_custom_call.1} parent=5 // pred_region
        %s148 = ssub.s32 %s14, 1
        // Predicated region
        $region13: #{tpu_custom_call.1} parent=11 // pred_check
          %p149 = pneg %p61
        $region14: #{tpu_custom_call.1} parent=11 // pred_check_branch
          %151 = sbr.rel (%p149) target = $region16
        $region15: #{tpu_custom_call.1} parent=11 // pred_region
          _
        $region16: #{tpu_custom_call.1} parent=11 // pred_fallthru
          _
        // Predicated region
        $region17: #{tpu_custom_call.1} parent=11 // pred_check
          %p152 = pneg %p82
        $region18: #{tpu_custom_call.1} parent=11 // pred_check_branch
          %154 = sbr.rel (%p152) target = $region20
        $region19: #{tpu_custom_call.1} parent=11 // pred_region
          _
        $region20: #{tpu_custom_call.1} parent=11 // pred_fallthru
          _
      $region12: #{tpu_custom_call.1} parent=5 // pred_fallthru
        _
      %p155 = scmp.lt.s32.totalorder %s14, 2
      // Predicated region
      $region21: #{tpu_custom_call.1} parent=5 // pred_check
        %p156 = pneg %p155
      $region22: #{tpu_custom_call.1} parent=5 // pred_check_branch
        %158 = sbr.rel (%p156) target = $region24
      $region23: #{tpu_custom_call.1} parent=5 // pred_region
        // Predicated region
        $region25: #{tpu_custom_call.1} parent=23 // pred_check
          %p159 = pneg %p34
        $region26: #{tpu_custom_call.1} parent=23 // pred_check_branch
          %161 = sbr.rel (%p159) target = $region28
        $region27: #{tpu_custom_call.1} parent=23 // pred_region
          %p162 = scmp.lt.s32.totalorder %s14, 1
          %s163 = scalar_select %p162, %s14, 1
          %s164 = smul.addr %s163, 8
          %s165 = scalar_lea.vmem %s0, %s164
        $region28: #{tpu_custom_call.1} parent=23 // pred_fallthru
          _
      $region24: #{tpu_custom_call.1} parent=5 // pred_fallthru
        _
      %p166 = scmp.le.s32.totalorder 1, %s14
      %p167 = scmp.lt.s32.totalorder %s14, 3
      %p168 = pnand %p166, %p167
      %p169 = pneg %p168
      // Predicated region
      $region29: #{tpu_custom_call.1} parent=5 // pred_check
        _
      $region30: #{tpu_custom_call.1} parent=5 // pred_check_branch
        %171 = sbr.rel (%p168) target = $region32
      $region31: #{tpu_custom_call.1} parent=5 // pred_region
        %s172 = ssub.s32 %s14, 1
        %p173 = scmp.lt.s32.totalorder %s19, 1
        %s174 = scalar_select %p173, %s19, 1
        %s175 = smul.addr %s174, 8
        %s176 = scalar_lea.vmem %s0, %s175
        %p177 = pneg %p40
        %p178 = pneg %p37
        %p179 = pneg %p61
        %p180 = pneg %p58
        %p181 = pneg %p82
        %p182 = pneg %p79
        %p183 = pneg %p108
        %p184 = pneg %p105
        %s185 = sand.u32 %s95, 1
        %s186 = scalar_lea.sflag [#allocation3], %s185
        %s187 = sand.u32 %s95, 1
        %s188 = smul.addr %s187, 8
        %s189 = scalar_lea.vmem [#allocation2], %s188
        %p190 = pneg %p134
        %p191 = pneg %p131
        %p192 = scmp.lt.s32.totalorder %s19, 1
        %s193 = scalar_select %p192, %s19, 1
        %s194 = smul.addr %s193, 8
        %s195 = scalar_lea.vmem %s4, %s194
        %p196 = scmp.lt.s32.totalorder %s19, 1
        %s197 = scalar_select %p196, %s19, 1
        %s198 = smul.addr %s197, 8
        %s199 = scalar_lea.vmem %s0, %s198
        %p200 = scmp.lt.s32.totalorder %s19, 1
        %s201 = scalar_select %p200, %s19, 1
        %s202 = smul.addr %s201, 8
        %s203 = scalar_lea.vmem %s4, %s202
        %v205 = vld [vmem:[%s199] sm:$0xff]
        %v206 = vpack.c.bf16 %v205, %v205
        %v207 = vld [vmem:[%s1] sm:$0xff]
        %v208 = vld [vmem:[%s1 + $0x8] sm:$0xf]
        %v209 = vld [vmem:[%s1 + $0xc] sm:$0xff]
        %v210 = vld [vmem:[%s1 + $0x14] sm:$0xf]
        %v211 = vld [vmem:[%s1 + $0x18] sm:$0xff]
        %v212 = vld [vmem:[%s1 + $0x20] sm:$0xf]
        %v213 = vld [vmem:[%s1 + $0x24] sm:$0xff]
        %v214 = vld [vmem:[%s1 + $0x2c] sm:$0xf]
        %v223 = vunpack.c.l.b16 %v207
        %v224 = vunpack.c.h.b16 %v207
        %v225 = vunpack.c.l.b16 %v208
        %v226 = vunpack.c.l.b16 %v209
        %v227 = vunpack.c.h.b16 %v209
        %v228 = vunpack.c.l.b16 %v210
        %v229 = vunpack.c.l.b16 %v211
        %v230 = vunpack.c.h.b16 %v211
        %v231 = vunpack.c.l.b16 %v212
        %v232 = vunpack.c.l.b16 %v213
        %v233 = vunpack.c.h.b16 %v213
        %v234 = vunpack.c.l.b16 %v214
        %v235 = vpack.c.b16 %v226, %v223
        %v236 = vpack.c.b16 %v227, %v224
        %v237 = vpack.c.b16 %v228, %v225
        %v238 = vpack.c.b16 %v232, %v229
        %v239 = vpack.c.b16 %v233, %v230
        %v240 = vpack.c.b16 %v234, %v231
        %vm247 = vcmask 261120
        %v249 = vsel %vm247, %v206, 0
        %251 = vmatprep.subr.bf16.mxu0 0
        %252 = vmatpush1.bf16.msra.mxu0 0
        %253 = vmatprep.subr.bf16.mxu0 0
        %254 = vmatpush1.bf16.msra.mxu0 0
        %255 = vmatprep.subr.bf16.mxu0 0
        %256 = vmatpush1.bf16.msra.mxu0 0
        %257 = vmatprep.subr.bf16.mxu0 0
        %258 = vmatpush1.bf16.msra.mxu0 0
        %259 = vmatprep.subr.bf16.mxu0 0
        %260 = vmatpush1.bf16.msra.mxu0 0
        %261 = vmatprep.subr.bf16.mxu0 0
        %262 = vmatpush1.bf16.msra.mxu0 0
        %263 = vmatprep.subr.bf16.mxu0 %v239
        %264 = vmatpush1.bf16.msra.mxu0 %v238
        %265 = vmatprep.subr.bf16.mxu0 %v236
        %266 = vmatpush1.bf16.msra.mxu0 %v235
        %267 = vmatprep.subr.bf16.mxu0 0
        %268 = vmatpush2.bf16.msra.mxu0 0
        %269 = vmatprep.subr.bf16.mxu0 0
        %270 = vmatpush2.bf16.msra.mxu0 0
        %271 = vmatprep.subr.bf16.mxu0 0
        %272 = vmatpush2.bf16.msra.mxu0 0
        %273 = vmatprep.subr.bf16.mxu0 0
        %274 = vmatpush2.bf16.msra.mxu0 0
        %275 = vmatprep.subr.bf16.mxu0 0
        %276 = vmatpush2.bf16.msra.mxu0 0
        %277 = vmatprep.subr.bf16.mxu0 0
        %278 = vmatpush2.bf16.msra.mxu0 0
        %279 = vmatprep.subr.bf16.mxu0 0
        %280 = vmatpush2.bf16.msra.mxu0 0
        %281 = vmatprep.subr.bf16.mxu0 0
        %282 = vmatpush2.bf16.msra.mxu0 0
        %283 = vmatprep.mubr.bf16.mxu0 0
        %284 = vmatmul.mubr.bf16.gmra.mxu0 %v249
        %v285 = vpop.f32.mrf.mxu0
        %v286 = vadd.f32 0.0, %v285
        %v287 = vpop.f32.mrf.mxu0
        %v288 = vadd.f32 0.0, %v287
        %v289 = vpop.f32.mrf.mxu0
        %v290 = vpop.f32.mrf.mxu0
        %291 = vdwg.mxu0
        %292 = vmatprep.subr.bf16.mxu0 0
        %293 = vmatpush1.bf16.msra.mxu0 0
        %294 = vmatprep.subr.bf16.mxu0 0
        %295 = vmatpush1.bf16.msra.mxu0 0
        %296 = vmatprep.subr.bf16.mxu0 0
        %297 = vmatpush1.bf16.msra.mxu0 0
        %298 = vmatprep.subr.bf16.mxu0 0
        %299 = vmatpush1.bf16.msra.mxu0 0
        %300 = vmatprep.subr.bf16.mxu0 0
        %301 = vmatpush1.bf16.msra.mxu0 0
        %302 = vmatprep.subr.bf16.mxu0 0
        %303 = vmatpush1.bf16.msra.mxu0 0
        %304 = vmatprep.subr.bf16.mxu0 0
        %305 = vmatpush1.bf16.msra.mxu0 %v240
        %306 = vmatprep.subr.bf16.mxu0 0
        %307 = vmatpush1.bf16.msra.mxu0 %v237
        %308 = vmatprep.subr.bf16.mxu0 0
        %309 = vmatpush2.bf16.msra.mxu0 0
        %310 = vmatprep.subr.bf16.mxu0 0
        %311 = vmatpush2.bf16.msra.mxu0 0
        %312 = vmatprep.subr.bf16.mxu0 0
        %313 = vmatpush2.bf16.msra.mxu0 0
        %314 = vmatprep.subr.bf16.mxu0 0
        %315 = vmatpush2.bf16.msra.mxu0 0
        %316 = vmatprep.subr.bf16.mxu0 0
        %317 = vmatpush2.bf16.msra.mxu0 0
        %318 = vmatprep.subr.bf16.mxu0 0
        %319 = vmatpush2.bf16.msra.mxu0 0
        %320 = vmatprep.subr.bf16.mxu0 0
        %321 = vmatpush2.bf16.msra.mxu0 0
        %322 = vmatprep.subr.bf16.mxu0 0
        %323 = vmatpush2.bf16.msra.mxu0 0
        %324 = vmatprep.mubr.bf16.mxu0 0
        %325 = vmatmul.mubr.bf16.gmra.mxu0 %v249
        %v326 = vpop.f32.mrf.mxu0
        %v327 = vadd.f32 0.0, %v326
        %v328 = vpop.f32.mrf.mxu0
        %v329 = vpop.f32.mrf.mxu0
        %v330 = vpop.f32.mrf.mxu0
        %331 = vdwg.mxu0
        %v332 = vpack.c.bf16 %v286, %v286
        %v333 = vpack.c.bf16 %v288, %v288
        %334 = vmatprep.subr.bf16.mxu0 0
        %335 = vmatpush1.bf16.xpose.msra.mxu0 0
        %336 = vmatprep.subr.bf16.mxu0 0
        %337 = vmatpush1.bf16.xpose.msra.mxu0 0
        %338 = vmatprep.subr.bf16.mxu0 0
        %339 = vmatpush1.bf16.xpose.msra.mxu0 0
        %340 = vmatprep.subr.bf16.mxu0 0
        %341 = vmatpush1.bf16.xpose.msra.mxu0 0
        %342 = vmatprep.subr.bf16.mxu0 0
        %343 = vmatpush1.bf16.xpose.msra.mxu0 0
        %344 = vmatprep.subr.bf16.mxu0 0
        %345 = vmatpush1.bf16.xpose.msra.mxu0 0
        %346 = vmatprep.subr.bf16.mxu0 0
        %347 = vmatpush1.bf16.xpose.msra.mxu0 0
        %348 = vmatprep.subr.bf16.mxu0 0
        %349 = vmatpush1.bf16.xpose.msra.mxu0 %v333
        %350 = vmatprep.subr.bf16.mxu0 0
        %351 = vmatpush2.bf16.xpose.msra.mxu0 0
        %352 = vmatprep.subr.bf16.mxu0 0
        %353 = vmatpush2.bf16.xpose.msra.mxu0 0
        %354 = vmatprep.subr.bf16.mxu0 0
        %355 = vmatpush2.bf16.xpose.msra.mxu0 0
        %356 = vmatprep.subr.bf16.mxu0 0
        %357 = vmatpush2.bf16.xpose.msra.mxu0 0
        %358 = vmatprep.subr.bf16.mxu0 0
        %359 = vmatpush2.bf16.xpose.msra.mxu0 0
        %360 = vmatprep.subr.bf16.mxu0 0
        %361 = vmatpush2.bf16.xpose.msra.mxu0 0
        %362 = vmatprep.subr.bf16.mxu0 0
        %363 = vmatpush2.bf16.xpose.msra.mxu0 0
        %364 = vmatprep.subr.bf16.mxu0 0
        %365 = vmatpush2.bf16.xpose.msra.mxu0 0
        %366 = vmatprep.mubr.bf16.mxu0 0
        %367 = vmatmul.mubr.bf16.gmra.mxu0 %v332
        %v368 = vpop.f32.mrf.mxu0
        %v369 = vadd.f32 0.0, %v368
        %v370 = vpop.f32.mrf.mxu0
        %v371 = vpop.f32.mrf.mxu0
        %v372 = vpop.f32.mrf.mxu0
        %373 = vdwg.mxu0
        %vm374 = vcmask 64512
        %v375 = vsel %vm374, %v369, -inf
        %376 = vmax.xlane.f32.xlu0 %v375
        %v377 = vpop.xlane.xlu0 %376
        %v378 = vsub.f32 %v369, %v377
        %v379 = vmul.f32 %v378, 1.442695
        %v380 = vpow.pop %v379
        %v381 = vsel %vm374, %v380, 0.0
        %382 = vadd.xlane.f32.xlu0 %v381
        %v383 = vpop.xlane.xlu0 %382
        %v384 = vpack.c.bf16 %v380, %v380
        %v385 = vpack.c.bf16 %v327, %v327
        %v387 = vsel %vm374, %v384, 0
        %vm389 = vcmask 1043456
        %v391 = vsel %vm389, %v385, 0
        %393 = vmatprep.subr.bf16.mxu0 0
        %394 = vmatpush1.bf16.msra.mxu0 0
        %395 = vmatprep.subr.bf16.mxu0 0
        %396 = vmatpush1.bf16.msra.mxu0 0
        %397 = vmatprep.subr.bf16.mxu0 0
        %398 = vmatpush1.bf16.msra.mxu0 0
        %399 = vmatprep.subr.bf16.mxu0 0
        %400 = vmatpush1.bf16.msra.mxu0 0
        %401 = vmatprep.subr.bf16.mxu0 0
        %402 = vmatpush1.bf16.msra.mxu0 0
        %403 = vmatprep.subr.bf16.mxu0 0
        %404 = vmatpush1.bf16.msra.mxu0 0
        %405 = vmatprep.subr.bf16.mxu0 0
        %406 = vmatpush1.bf16.msra.mxu0 0
        %407 = vmatprep.subr.bf16.mxu0 0
        %408 = vmatpush1.bf16.msra.mxu0 %v391
        %409 = vmatprep.subr.bf16.mxu0 0
        %410 = vmatpush2.bf16.msra.mxu0 0
        %411 = vmatprep.subr.bf16.mxu0 0
        %412 = vmatpush2.bf16.msra.mxu0 0
        %413 = vmatprep.subr.bf16.mxu0 0
        %414 = vmatpush2.bf16.msra.mxu0 0
        %415 = vmatprep.subr.bf16.mxu0 0
        %416 = vmatpush2.bf16.msra.mxu0 0
        %417 = vmatprep.subr.bf16.mxu0 0
        %418 = vmatpush2.bf16.msra.mxu0 0
        %419 = vmatprep.subr.bf16.mxu0 0
        %420 = vmatpush2.bf16.msra.mxu0 0
        %421 = vmatprep.subr.bf16.mxu0 0
        %422 = vmatpush2.bf16.msra.mxu0 0
        %423 = vmatprep.subr.bf16.mxu0 0
        %424 = vmatpush2.bf16.msra.mxu0 0
        %425 = vmatprep.mubr.bf16.mxu0 0
        %426 = vmatmul.mubr.bf16.gmra.mxu0 %v387
        %v427 = vpop.f32.mrf.mxu0
        %v428 = vadd.f32 0.0, %v427
        %v429 = vpop.f32.mrf.mxu0
        %v430 = vpop.f32.mrf.mxu0
        %v431 = vpop.f32.mrf.mxu0
        %432 = vdwg.mxu0
        %v433 = vrcp.pop %v383
        %v434 = vmul.f32 %v428, %v433
        %v435 = vpack.c.bf16 %v434, %v434
        %v436 = vld [vmem:[%s2] sm:$0xf]
        %v437 = vld [vmem:[%s2 + $0x4] sm:$0xf]
        %v438 = vld [vmem:[%s2 + $0x8] sm:$0xf]
        %v439 = vld [vmem:[%s2 + $0xc] sm:$0xf]
        %v440 = vld [vmem:[%s2 + $0x10] sm:$0xf]
        %v441 = vld [vmem:[%s2 + $0x14] sm:$0xf]
        %v442 = vld [vmem:[%s2 + $0x18] sm:$0xf]
        %v443 = vld [vmem:[%s2 + $0x1c] sm:$0xf]
        %v444 = vld [vmem:[%s2 + $0x20] sm:$0xf]
        %v445 = vld [vmem:[%s2 + $0x24] sm:$0xf]
        %v446 = vld [vmem:[%s2 + $0x28] sm:$0xf]
        %v447 = vld [vmem:[%s2 + $0x2c] sm:$0xf]
        %v448 = vld [vmem:[%s2 + $0x30] sm:$0xf]
        %v449 = vld [vmem:[%s2 + $0x34] sm:$0xf]
        %v450 = vld [vmem:[%s2 + $0x38] sm:$0xf]
        %v451 = vld [vmem:[%s2 + $0x3c] sm:$0xf]
        %v468 = vunpack.c.l.b16 %v436
        %v469 = vunpack.c.l.b16 %v437
        %v470 = vunpack.c.l.b16 %v438
        %v471 = vunpack.c.l.b16 %v439
        %v472 = vunpack.c.l.b16 %v440
        %v473 = vunpack.c.l.b16 %v441
        %v474 = vunpack.c.l.b16 %v442
        %v475 = vunpack.c.l.b16 %v443
        %v476 = vunpack.c.l.b16 %v444
        %v477 = vunpack.c.l.b16 %v445
        %v478 = vunpack.c.l.b16 %v446
        %v479 = vunpack.c.l.b16 %v447
        %v480 = vunpack.c.l.b16 %v448
        %v481 = vunpack.c.l.b16 %v449
        %v482 = vunpack.c.l.b16 %v450
        %v483 = vunpack.c.l.b16 %v451
        %v484 = vpack.c.b16 %v469, %v468
        %v485 = vpack.c.b16 %v471, %v470
        %v486 = vpack.c.b16 %v473, %v472
        %v487 = vpack.c.b16 %v475, %v474
        %v488 = vpack.c.b16 %v477, %v476
        %v489 = vpack.c.b16 %v479, %v478
        %v490 = vpack.c.b16 %v481, %v480
        %v491 = vpack.c.b16 %v483, %v482
        %500 = vmatprep.subr.bf16.mxu0 0
        %501 = vmatpush1.bf16.msra.mxu0 %v491
        %502 = vmatprep.subr.bf16.mxu0 0
        %503 = vmatpush1.bf16.msra.mxu0 %v490
        %504 = vmatprep.subr.bf16.mxu0 0
        %505 = vmatpush1.bf16.msra.mxu0 %v489
        %506 = vmatprep.subr.bf16.mxu0 0
        %507 = vmatpush1.bf16.msra.mxu0 %v488
        %508 = vmatprep.subr.bf16.mxu0 0
        %509 = vmatpush1.bf16.msra.mxu0 %v487
        %510 = vmatprep.subr.bf16.mxu0 0
        %511 = vmatpush1.bf16.msra.mxu0 %v486
        %512 = vmatprep.subr.bf16.mxu0 0
        %513 = vmatpush1.bf16.msra.mxu0 %v485
        %514 = vmatprep.subr.bf16.mxu0 0
        %515 = vmatpush1.bf16.msra.mxu0 %v484
        %516 = vmatprep.subr.bf16.mxu0 0
        %517 = vmatpush2.bf16.msra.mxu0 0
        %518 = vmatprep.subr.bf16.mxu0 0
        %519 = vmatpush2.bf16.msra.mxu0 0
        %520 = vmatprep.subr.bf16.mxu0 0
        %521 = vmatpush2.bf16.msra.mxu0 0
        %522 = vmatprep.subr.bf16.mxu0 0
        %523 = vmatpush2.bf16.msra.mxu0 0
        %524 = vmatprep.subr.bf16.mxu0 0
        %525 = vmatpush2.bf16.msra.mxu0 0
        %526 = vmatprep.subr.bf16.mxu0 0
        %527 = vmatpush2.bf16.msra.mxu0 0
        %528 = vmatprep.subr.bf16.mxu0 0
        %529 = vmatpush2.bf16.msra.mxu0 0
        %530 = vmatprep.subr.bf16.mxu0 0
        %531 = vmatpush2.bf16.msra.mxu0 0
        %532 = vmatprep.mubr.bf16.mxu0 0
        %533 = vmatmul.mubr.bf16.gmra.mxu0 %v435
        %v534 = vpop.f32.mrf.mxu0
        %v535 = vadd.f32 0.0, %v534
        %v536 = vpop.f32.mrf.mxu0
        %v537 = vpop.f32.mrf.mxu0
        %v538 = vpop.f32.mrf.mxu0
        %539 = vdwg.mxu0
        %v540 = vadd.f32 %v205, %v535
        %541 = vst.msk [vmem:[%s189] sm:$0xff] %vm247, %v540
        %v542 = vrcp.pop %v383
        %v543 = vmul.f32 %v380, %v542
        %544 = vst.msk [vmem:[%s203] sm:$0xff] %vm374, %v543
        %s545 = sand.u32 %s95, 1
        %s546 = scalar_lea.sflag [#allocation3], %s545
        %s547 = sand.u32 %s95, 1
        %s548 = smul.addr %s547, 8
        %s549 = scalar_lea.vmem [#allocation2], %s548
        %p550 = scmp.lt.s32.totalorder %s19, 1
        %s551 = scalar_select %p550, %s19, 1
        %s552 = smul.addr %s551, 8
        %s553 = scalar_lea.vmem %s4, %s552
        // Predicated region
        $region33: #{tpu_custom_call.1} parent=31 // pred_check
          %p554 = pneg %p105
        $region34: #{tpu_custom_call.1} parent=31 // pred_check_branch
          %556 = sbr.rel (%p554) target = $region36
        $region35: #{tpu_custom_call.1} parent=31 // pred_region
          %s558 = ssub.s32 128, 128
          %559 = vsyncadd %s546, %s558
          %s560 = smul.addr %s19, 128
          %s561 = scalar_lea.hbm %s3, %s560
          %s563 = sshll.u32 %s549, 4
          %s564 = int_to_ptr.vmem [resolvable:$true] %s563
          %566 = dma.vmem_to_hbm [thread:$0]  %s564, 128, %s561, %s546
        $region36: #{tpu_custom_call.1} parent=31 // pred_fallthru
          _
        // Predicated region
        $region37: #{tpu_custom_call.1} parent=31 // pred_check
          %p567 = pneg %p131
        $region38: #{tpu_custom_call.1} parent=31 // pred_check_branch
          %569 = sbr.rel (%p567) target = $region40
        $region39: #{tpu_custom_call.1} parent=31 // pred_region
          _
        $region40: #{tpu_custom_call.1} parent=31 // pred_fallthru
          _
      $region32: #{tpu_custom_call.1} parent=5 // pred_fallthru
        _
      %p570 = scmp.le.s32.totalorder 2, %s14
      // Predicated region
      $region41: #{tpu_custom_call.1} parent=5 // pred_check
        %p571 = pneg %p570
      $region42: #{tpu_custom_call.1} parent=5 // pred_check_branch
        %573 = sbr.rel (%p571) target = $region44
      $region43: #{tpu_custom_call.1} parent=5 // pred_region
        %s574 = ssub.s32 %s14, 2
        // Predicated region
        $region45: #{tpu_custom_call.1} parent=43 // pred_check
          %p575 = pneg %p111
        $region46: #{tpu_custom_call.1} parent=43 // pred_check_branch
          %577 = sbr.rel (%p575) target = $region48
        $region47: #{tpu_custom_call.1} parent=43 // pred_region
          %s578 = sand.u32 %s96, 1
          %s579 = scalar_lea.sflag [#allocation3], %s578
          %s580 = sand.u32 %s96, 1
          %s581 = smul.addr %s580, 8
          %s582 = scalar_lea.vmem [#allocation2], %s581
          %583 = dma.done %s579, 128
        $region48: #{tpu_custom_call.1} parent=43 // pred_fallthru
          _
        // Predicated region
        $region49: #{tpu_custom_call.1} parent=43 // pred_check
          %p584 = pneg %p137
        $region50: #{tpu_custom_call.1} parent=43 // pred_check_branch
          %586 = sbr.rel (%p584) target = $region52
        $region51: #{tpu_custom_call.1} parent=43 // pred_region
          %p587 = scmp.lt.s32.totalorder %s20, 1
          %s588 = scalar_select %p587, %s20, 1
          %s589 = smul.addr %s588, 8
          %s590 = scalar_lea.vmem %s4, %s589
        $region52: #{tpu_custom_call.1} parent=43 // pred_fallthru
          _
      $region44: #{tpu_custom_call.1} parent=5 // pred_fallthru
        _
    $region6: #{tpu_custom_call.1} parent=1 // loop_footer
      %s18 = sadd.s32 1, %s14
    $region7: #{tpu_custom_call.1} parent=1 // loop_footer_branch
      %13 = sbr.rel target = $region3
    $region8: #{tpu_custom_call.1} parent=1 // loop_exit
      _
    %591 = vsyncpa [#allocation3], 1
    %s592 = scalar_lea.sflag [#allocation3], 1
    %593 = vsyncpa %s592, 1

</llo_original>
